<compile_context>
chip_gen: v7x
topology: tpu7x:2x2x1
jax: 0.10.0
libtpu: 0.0.40
codegen_flags: <defaults>
</compile_context>

<pallas_src>
import jax
import jax.numpy as jnp
from jax.experimental import pallas as pl
from jax.experimental.pallas import tpu as pltpu


def _round_up(n, m):
    return ((n + m - 1) // m) * m


def _dense_vpu(w, b, x):
    """y = w @ x + b as unrolled VPU broadcast-FMAs (no MXU).

    w: (out, in) f32, b: (out, 1) f32, x: (in, C) f32  ->  (out, C) f32
    """
    out_dim, in_dim = w.shape
    c = x.shape[1]
    acc = jnp.broadcast_to(b, (out_dim, c))            # bias, lane-broadcast
    for k in range(in_dim):                            # unrolled; in_dim <= 16
        acc = acc + w[:, k:k + 1] * x[k:k + 1, :]      # (out,1)*(1,C) -> (out,C)
    return acc


def _make_kernel(n_inner, chunk):
    """Build a kernel that sweeps its (8, TB) block in `n_inner` chunks of
    `chunk` lanes, keeping each chunk's working set in vregs (no spills)."""

    def pima_kernel(xt_ref,
                    w1_ref, b1_ref,
                    w2_ref, b2_ref,
                    w3_ref, b3_ref,
                    w4c_ref, b4_ref,
                    o_ref):
        # Load the tiny resident weights once per grid step.
        w1 = w1_ref[...]; b1 = b1_ref[...]
        w2 = w2_ref[...]; b2 = b2_ref[...]
        w3 = w3_ref[...]; b3 = b3_ref[...]
        w4c = w4c_ref[...]; b4 = b4_ref[...]          # w4 as an (8,1) column

        for c in range(n_inner):                       # static, 128-aligned slices
            lo = c * chunk
            x = xt_ref[:, lo:lo + chunk]               # (8, C) batch-on-lanes

            # input_layer: Linear(8, 12) + ReLU
            h = jnp.maximum(_dense_vpu(w1, b1, x), 0.0)        # (12, C)
            # hidden1: Linear(12, 16) + ReLU ; dropout1 = identity (eval)
            h = jnp.maximum(_dense_vpu(w2, b2, h), 0.0)        # (16, C)
            # hidden2: Linear(16, 8) + ReLU ; dropout2 = identity (eval)
            h = jnp.maximum(_dense_vpu(w3, b3, h), 0.0)        # (8, C)
            # output_layer: Linear(8, 1) as VPU mul + XLU sublane reduce,
            # then Sigmoid on the EUP.
            y = jnp.sum(h * w4c, axis=0, keepdims=True) + b4   # (1, C)
            o_ref[:, lo:lo + chunk] = jax.nn.sigmoid(y)        # lane-dense store

    return pima_kernel


def pima_forward(x, params, tile_b=8192, inner_b=1024):
    """x: (B, 8) float32 -> (B, 1) float32.

    tile_b  : target grid-block size along the batch (amortizes per-step cost).
    inner_b : in-kernel chunk (register-resident working set); sweepable.
    """
    (w1, b1, w2, b2, w3, b3, w4, b4) = params
    B = x.shape[0]

    # Inner chunk: multiple of 128 lanes, clamped for small batches.
    C = min(inner_b, _round_up(B, 128))
    # Grid block: multiple of the inner chunk, clamped to the (padded) batch.
    TB = min(_round_up(tile_b, C), _round_up(B, C))
    Bp = _round_up(B, TB)
    n_tiles = Bp // TB
    n_inner = TB // C

    # Layout plumbing: zero-pad the ragged tail and present x transposed
    # (features on sublanes, batch on the 128-wide lane axis).
    # TODO(synk): optionally stream x as bf16 (cast to f32 in-kernel) to halve
    # HBM traffic on v6e/v7x; kept f32 here to match PyTorch numerics exactly.
    xp = jnp.pad(x.astype(jnp.float32), ((0, Bp - B), (0, 0)))
    xt = xp.T                                          # (8, Bp)
    w4c = w4.reshape(8, 1)                             # (1,8) -> (8,1) column

    resident = lambda a: pl.BlockSpec(a.shape, lambda i: (0, 0))  # VMEM-resident

    out = pl.pallas_call(
        _make_kernel(n_inner, C),
        out_shape=jax.ShapeDtypeStruct((1, Bp), jnp.float32),
        grid=(n_tiles,),
        in_specs=[pl.BlockSpec((8, TB), lambda i: (0, i)),
                  resident(w1), resident(b1),
                  resident(w2), resident(b2),
                  resident(w3), resident(b3),
                  resident(w4c), resident(b4)],
        out_specs=pl.BlockSpec((1, TB), lambda i: (0, i)),
        compiler_params=pltpu.CompilerParams(
            dimension_semantics=("parallel",),          # shard batch across TCs (v7x)
            vmem_limit_bytes=32 * 1024 * 1024),
    )(xt, w1, b1, w2, b2, w3, b3, w4c, b4)

    return out[0, :B].reshape(B, 1)


def xavier_normal(key, fan_out, fan_in):
    # matches nn.init.xavier_normal_ (gain=1): std = sqrt(2 / (fan_in + fan_out)),
    # stored in PyTorch (out_features, in_features) layout.
    std = (2.0 / (fan_in + fan_out)) ** 0.5
    return std * jax.random.normal(key, (fan_out, fan_in), dtype=jnp.float32)


def linear_bias(key, fan_out, fan_in):
    # PyTorch Linear default bias init: U(-1/sqrt(fan_in), 1/sqrt(fan_in)),
    # stored as an (out, 1) column for the transposed-layout kernel.
    bound = 1.0 / (fan_in ** 0.5)
    return jax.random.uniform(key, (fan_out, 1), dtype=jnp.float32,
                              minval=-bound, maxval=bound)


def init_params(key):
    ks = jax.random.split(key, 8)
    w1 = xavier_normal(ks[0], 12, 8)
    b1 = linear_bias(ks[1], 12, 8)
    w2 = xavier_normal(ks[2], 16, 12)
    b2 = linear_bias(ks[3], 16, 12)
    w3 = xavier_normal(ks[4], 8, 16)
    b3 = linear_bias(ks[5], 8, 16)
    w4 = xavier_normal(ks[6], 1, 8)
    b4 = linear_bias(ks[7], 1, 8)
    return (w1, b1, w2, b2, w3, b3, w4, b4)


def pima_reference(x, params):
    (w1, b1, w2, b2, w3, b3, w4, b4) = params
    dot = lambda a, b: jnp.dot(a, b, precision=jax.lax.Precision.HIGHEST)
    h = jnp.maximum(dot(x, w1.T) + b1.T, 0.0)
    h = jnp.maximum(dot(h, w2.T) + b2.T, 0.0)
    h = jnp.maximum(dot(h, w3.T) + b3.T, 0.0)
    return jax.nn.sigmoid(dot(h, w4.T) + b4.T)


if __name__ == "__main__":
    key = jax.random.PRNGKey(0)
    k_x, k_p, k_x2 = jax.random.split(key, 3)
    params = init_params(k_p)

    # Small demo batch (not a multiple of 128 -> exercises the padded tile).
    B = 16
    x = jax.random.normal(k_x, (B, 8), dtype=jnp.float32)
    out = jax.block_until_ready(pima_forward(x, params))
    ref = pima_reference(x, params)
    assert out.shape == (B, 1)
    assert jnp.allclose(out, ref, atol=1e-5, rtol=1e-5), \
        float(jnp.max(jnp.abs(out - ref)))

    # Second check: multi-tile grid + multiple in-kernel chunks per block.
    B2 = 2500
    x2 = jax.random.normal(k_x2, (B2, 8), dtype=jnp.float32)
    out2 = jax.block_until_ready(pima_forward(x2, params, tile_b=2048, inner_b=1024))
    ref2 = pima_reference(x2, params)
    assert out2.shape == (B2, 1)
    assert jnp.allclose(out2, ref2, atol=1e-5, rtol=1e-5), \
        float(jnp.max(jnp.abs(out2 - ref2)))

    print("KERNEL_OK")
</pallas_src>

<mosaic_0001>
module attributes {stable_mosaic.version = 11 : i64} {
  func.func @pima_kernel(%arg0: i32, %arg1: memref<8x128xf32, #tpu.memory_space<vmem>>, %arg2: memref<12x8xf32, #tpu.memory_space<vmem>>, %arg3: memref<12x1xf32, #tpu.memory_space<vmem>>, %arg4: memref<16x12xf32, #tpu.memory_space<vmem>>, %arg5: memref<16x1xf32, #tpu.memory_space<vmem>>, %arg6: memref<8x16xf32, #tpu.memory_space<vmem>>, %arg7: memref<8x1xf32, #tpu.memory_space<vmem>>, %arg8: memref<8x1xf32, #tpu.memory_space<vmem>>, %arg9: memref<1x1xf32, #tpu.memory_space<vmem>>, %arg10: memref<1x128xf32, #tpu.memory_space<vmem>>) attributes {dimension_semantics = [#tpu.dimension_semantics<parallel>], iteration_bounds = array<i64: 1>, scalar_prefetch = 0 : i64, scratch_operands = 0 : i64, tpu.core_type = #tpu.core_type<tc>, window_params = [{transform_indices = @transform_0, window_bounds = array<i64: 8, 128>}, {pipeline_mode = #tpu.pipeline_mode<synchronous>, transform_indices = @transform_1, window_bounds = array<i64: 12, 8>}, {pipeline_mode = #tpu.pipeline_mode<synchronous>, transform_indices = @transform_2, window_bounds = array<i64: 12, 1>}, {pipeline_mode = #tpu.pipeline_mode<synchronous>, transform_indices = @transform_3, window_bounds = array<i64: 16, 12>}, {pipeline_mode = #tpu.pipeline_mode<synchronous>, transform_indices = @transform_4, window_bounds = array<i64: 16, 1>}, {pipeline_mode = #tpu.pipeline_mode<synchronous>, transform_indices = @transform_5, window_bounds = array<i64: 8, 16>}, {pipeline_mode = #tpu.pipeline_mode<synchronous>, transform_indices = @transform_6, window_bounds = array<i64: 8, 1>}, {pipeline_mode = #tpu.pipeline_mode<synchronous>, transform_indices = @transform_7, window_bounds = array<i64: 8, 1>}, {pipeline_mode = #tpu.pipeline_mode<synchronous>, transform_indices = @transform_8, window_bounds = array<i64: 1, 1>}, {transform_indices = @transform_9, window_bounds = array<i64: 1, 128>}]} {
    %c0 = arith.constant 0 : index
    %c0_0 = arith.constant 0 : index
    %0 = vector.load %arg2[%c0, %c0_0] : memref<12x8xf32, #tpu.memory_space<vmem>>, vector<12x8xf32>
    %c0_1 = arith.constant 0 : index
    %c0_2 = arith.constant 0 : index
    %1 = vector.load %arg3[%c0_1, %c0_2] : memref<12x1xf32, #tpu.memory_space<vmem>>, vector<12x1xf32>
    %c0_3 = arith.constant 0 : index
    %c0_4 = arith.constant 0 : index
    %2 = vector.load %arg4[%c0_3, %c0_4] : memref<16x12xf32, #tpu.memory_space<vmem>>, vector<16x12xf32>
    %c0_5 = arith.constant 0 : index
    %c0_6 = arith.constant 0 : index
    %3 = vector.load %arg5[%c0_5, %c0_6] : memref<16x1xf32, #tpu.memory_space<vmem>>, vector<16x1xf32>
    %c0_7 = arith.constant 0 : index
    %c0_8 = arith.constant 0 : index
    %4 = vector.load %arg6[%c0_7, %c0_8] : memref<8x16xf32, #tpu.memory_space<vmem>>, vector<8x16xf32>
    %c0_9 = arith.constant 0 : index
    %c0_10 = arith.constant 0 : index
    %5 = vector.load %arg7[%c0_9, %c0_10] : memref<8x1xf32, #tpu.memory_space<vmem>>, vector<8x1xf32>
    %c0_11 = arith.constant 0 : index
    %c0_12 = arith.constant 0 : index
    %6 = vector.load %arg8[%c0_11, %c0_12] : memref<8x1xf32, #tpu.memory_space<vmem>>, vector<8x1xf32>
    %c0_13 = arith.constant 0 : index
    %c0_14 = arith.constant 0 : index
    %7 = vector.load %arg9[%c0_13, %c0_14] : memref<1x1xf32, #tpu.memory_space<vmem>>, vector<1x1xf32>
    %c0_15 = arith.constant 0 : index
    %c0_16 = arith.constant 0 : index
    %8 = vector.load %arg1[%c0_15, %c0_16] : memref<8x128xf32, #tpu.memory_space<vmem>>, vector<8x128xf32>
    %9 = vector.shape_cast %1 : vector<12x1xf32> to vector<12x1xf32>
    %10 = vector.broadcast %9 : vector<12x1xf32> to vector<12x128xf32>
    %11 = vector.extract_strided_slice %0 {offsets = [0, 0], sizes = [12, 1], strides = [1, 1]} : vector<12x8xf32> to vector<12x1xf32>
    %12 = vector.extract_strided_slice %8 {offsets = [0, 0], sizes = [1, 128], strides = [1, 1]} : vector<8x128xf32> to vector<1x128xf32>
    %13 = vector.broadcast %11 : vector<12x1xf32> to vector<12x128xf32>
    %14 = vector.broadcast %12 : vector<1x128xf32> to vector<12x128xf32>
    %15 = arith.mulf %13, %14 : vector<12x128xf32>
    %16 = arith.addf %10, %15 : vector<12x128xf32>
    %17 = vector.extract_strided_slice %0 {offsets = [0, 1], sizes = [12, 1], strides = [1, 1]} : vector<12x8xf32> to vector<12x1xf32>
    %18 = vector.extract_strided_slice %8 {offsets = [1, 0], sizes = [1, 128], strides = [1, 1]} : vector<8x128xf32> to vector<1x128xf32>
    %19 = vector.broadcast %17 : vector<12x1xf32> to vector<12x128xf32>
    %20 = vector.broadcast %18 : vector<1x128xf32> to vector<12x128xf32>
    %21 = arith.mulf %19, %20 : vector<12x128xf32>
    %22 = arith.addf %16, %21 : vector<12x128xf32>
    %23 = vector.extract_strided_slice %0 {offsets = [0, 2], sizes = [12, 1], strides = [1, 1]} : vector<12x8xf32> to vector<12x1xf32>
    %24 = vector.extract_strided_slice %8 {offsets = [2, 0], sizes = [1, 128], strides = [1, 1]} : vector<8x128xf32> to vector<1x128xf32>
    %25 = vector.broadcast %23 : vector<12x1xf32> to vector<12x128xf32>
    %26 = vector.broadcast %24 : vector<1x128xf32> to vector<12x128xf32>
    %27 = arith.mulf %25, %26 : vector<12x128xf32>
    %28 = arith.addf %22, %27 : vector<12x128xf32>
    %29 = vector.extract_strided_slice %0 {offsets = [0, 3], sizes = [12, 1], strides = [1, 1]} : vector<12x8xf32> to vector<12x1xf32>
    %30 = vector.extract_strided_slice %8 {offsets = [3, 0], sizes = [1, 128], strides = [1, 1]} : vector<8x128xf32> to vector<1x128xf32>
    %31 = vector.broadcast %29 : vector<12x1xf32> to vector<12x128xf32>
    %32 = vector.broadcast %30 : vector<1x128xf32> to vector<12x128xf32>
    %33 = arith.mulf %31, %32 : vector<12x128xf32>
    %34 = arith.addf %28, %33 : vector<12x128xf32>
    %35 = vector.extract_strided_slice %0 {offsets = [0, 4], sizes = [12, 1], strides = [1, 1]} : vector<12x8xf32> to vector<12x1xf32>
    %36 = vector.extract_strided_slice %8 {offsets = [4, 0], sizes = [1, 128], strides = [1, 1]} : vector<8x128xf32> to vector<1x128xf32>
    %37 = vector.broadcast %35 : vector<12x1xf32> to vector<12x128xf32>
    %38 = vector.broadcast %36 : vector<1x128xf32> to vector<12x128xf32>
    %39 = arith.mulf %37, %38 : vector<12x128xf32>
    %40 = arith.addf %34, %39 : vector<12x128xf32>
    %41 = vector.extract_strided_slice %0 {offsets = [0, 5], sizes = [12, 1], strides = [1, 1]} : vector<12x8xf32> to vector<12x1xf32>
    %42 = vector.extract_strided_slice %8 {offsets = [5, 0], sizes = [1, 128], strides = [1, 1]} : vector<8x128xf32> to vector<1x128xf32>
    %43 = vector.broadcast %41 : vector<12x1xf32> to vector<12x128xf32>
    %44 = vector.broadcast %42 : vector<1x128xf32> to vector<12x128xf32>
    %45 = arith.mulf %43, %44 : vector<12x128xf32>
    %46 = arith.addf %40, %45 : vector<12x128xf32>
    %47 = vector.extract_strided_slice %0 {offsets = [0, 6], sizes = [12, 1], strides = [1, 1]} : vector<12x8xf32> to vector<12x1xf32>
    %48 = vector.extract_strided_slice %8 {offsets = [6, 0], sizes = [1, 128], strides = [1, 1]} : vector<8x128xf32> to vector<1x128xf32>
    %49 = vector.broadcast %47 : vector<12x1xf32> to vector<12x128xf32>
    %50 = vector.broadcast %48 : vector<1x128xf32> to vector<12x128xf32>
    %51 = arith.mulf %49, %50 : vector<12x128xf32>
    %52 = arith.addf %46, %51 : vector<12x128xf32>
    %53 = vector.extract_strided_slice %0 {offsets = [0, 7], sizes = [12, 1], strides = [1, 1]} : vector<12x8xf32> to vector<12x1xf32>
    %54 = vector.extract_strided_slice %8 {offsets = [7, 0], sizes = [1, 128], strides = [1, 1]} : vector<8x128xf32> to vector<1x128xf32>
    %55 = vector.broadcast %53 : vector<12x1xf32> to vector<12x128xf32>
    %56 = vector.broadcast %54 : vector<1x128xf32> to vector<12x128xf32>
    %57 = arith.mulf %55, %56 : vector<12x128xf32>
    %58 = arith.addf %52, %57 : vector<12x128xf32>
    %cst = arith.constant 0.000000e+00 : f32
    %59 = vector.broadcast %cst : f32 to vector<12x128xf32>
    %60 = arith.maximumf %58, %59 : vector<12x128xf32>
    %61 = vector.shape_cast %3 : vector<16x1xf32> to vector<16x1xf32>
    %62 = vector.broadcast %61 : vector<16x1xf32> to vector<16x128xf32>
    %63 = vector.extract_strided_slice %2 {offsets = [0, 0], sizes = [16, 1], strides = [1, 1]} : vector<16x12xf32> to vector<16x1xf32>
    %64 = vector.extract_strided_slice %60 {offsets = [0, 0], sizes = [1, 128], strides = [1, 1]} : vector<12x128xf32> to vector<1x128xf32>
    %65 = vector.broadcast %63 : vector<16x1xf32> to vector<16x128xf32>
    %66 = vector.broadcast %64 : vector<1x128xf32> to vector<16x128xf32>
    %67 = arith.mulf %65, %66 : vector<16x128xf32>
    %68 = arith.addf %62, %67 : vector<16x128xf32>
    %69 = vector.extract_strided_slice %2 {offsets = [0, 1], sizes = [16, 1], strides = [1, 1]} : vector<16x12xf32> to vector<16x1xf32>
    %70 = vector.extract_strided_slice %60 {offsets = [1, 0], sizes = [1, 128], strides = [1, 1]} : vector<12x128xf32> to vector<1x128xf32>
    %71 = vector.broadcast %69 : vector<16x1xf32> to vector<16x128xf32>
    %72 = vector.broadcast %70 : vector<1x128xf32> to vector<16x128xf32>
    %73 = arith.mulf %71, %72 : vector<16x128xf32>
    %74 = arith.addf %68, %73 : vector<16x128xf32>
    %75 = vector.extract_strided_slice %2 {offsets = [0, 2], sizes = [16, 1], strides = [1, 1]} : vector<16x12xf32> to vector<16x1xf32>
    %76 = vector.extract_strided_slice %60 {offsets = [2, 0], sizes = [1, 128], strides = [1, 1]} : vector<12x128xf32> to vector<1x128xf32>
    %77 = vector.broadcast %75 : vector<16x1xf32> to vector<16x128xf32>
    %78 = vector.broadcast %76 : vector<1x128xf32> to vector<16x128xf32>
    %79 = arith.mulf %77, %78 : vector<16x128xf32>
    %80 = arith.addf %74, %79 : vector<16x128xf32>
    %81 = vector.extract_strided_slice %2 {offsets = [0, 3], sizes = [16, 1], strides = [1, 1]} : vector<16x12xf32> to vector<16x1xf32>
    %82 = vector.extract_strided_slice %60 {offsets = [3, 0], sizes = [1, 128], strides = [1, 1]} : vector<12x128xf32> to vector<1x128xf32>
    %83 = vector.broadcast %81 : vector<16x1xf32> to vector<16x128xf32>
    %84 = vector.broadcast %82 : vector<1x128xf32> to vector<16x128xf32>
    %85 = arith.mulf %83, %84 : vector<16x128xf32>
    %86 = arith.addf %80, %85 : vector<16x128xf32>
    %87 = vector.extract_strided_slice %2 {offsets = [0, 4], sizes = [16, 1], strides = [1, 1]} : vector<16x12xf32> to vector<16x1xf32>
    %88 = vector.extract_strided_slice %60 {offsets = [4, 0], sizes = [1, 128], strides = [1, 1]} : vector<12x128xf32> to vector<1x128xf32>
    %89 = vector.broadcast %87 : vector<16x1xf32> to vector<16x128xf32>
    %90 = vector.broadcast %88 : vector<1x128xf32> to vector<16x128xf32>
    %91 = arith.mulf %89, %90 : vector<16x128xf32>
    %92 = arith.addf %86, %91 : vector<16x128xf32>
    %93 = vector.extract_strided_slice %2 {offsets = [0, 5], sizes = [16, 1], strides = [1, 1]} : vector<16x12xf32> to vector<16x1xf32>
    %94 = vector.extract_strided_slice %60 {offsets = [5, 0], sizes = [1, 128], strides = [1, 1]} : vector<12x128xf32> to vector<1x128xf32>
    %95 = vector.broadcast %93 : vector<16x1xf32> to vector<16x128xf32>
    %96 = vector.broadcast %94 : vector<1x128xf32> to vector<16x128xf32>
    %97 = arith.mulf %95, %96 : vector<16x128xf32>
    %98 = arith.addf %92, %97 : vector<16x128xf32>
    %99 = vector.extract_strided_slice %2 {offsets = [0, 6], sizes = [16, 1], strides = [1, 1]} : vector<16x12xf32> to vector<16x1xf32>
    %100 = vector.extract_strided_slice %60 {offsets = [6, 0], sizes = [1, 128], strides = [1, 1]} : vector<12x128xf32> to vector<1x128xf32>
    %101 = vector.broadcast %99 : vector<16x1xf32> to vector<16x128xf32>
    %102 = vector.broadcast %100 : vector<1x128xf32> to vector<16x128xf32>
    %103 = arith.mulf %101, %102 : vector<16x128xf32>
    %104 = arith.addf %98, %103 : vector<16x128xf32>
    %105 = vector.extract_strided_slice %2 {offsets = [0, 7], sizes = [16, 1], strides = [1, 1]} : vector<16x12xf32> to vector<16x1xf32>
    %106 = vector.extract_strided_slice %60 {offsets = [7, 0], sizes = [1, 128], strides = [1, 1]} : vector<12x128xf32> to vector<1x128xf32>
    %107 = vector.broadcast %105 : vector<16x1xf32> to vector<16x128xf32>
    %108 = vector.broadcast %106 : vector<1x128xf32> to vector<16x128xf32>
    %109 = arith.mulf %107, %108 : vector<16x128xf32>
    %110 = arith.addf %104, %109 : vector<16x128xf32>
    %111 = vector.extract_strided_slice %2 {offsets = [0, 8], sizes = [16, 1], strides = [1, 1]} : vector<16x12xf32> to vector<16x1xf32>
    %112 = vector.extract_strided_slice %60 {offsets = [8, 0], sizes = [1, 128], strides = [1, 1]} : vector<12x128xf32> to vector<1x128xf32>
    %113 = vector.broadcast %111 : vector<16x1xf32> to vector<16x128xf32>
    %114 = vector.broadcast %112 : vector<1x128xf32> to vector<16x128xf32>
    %115 = arith.mulf %113, %114 : vector<16x128xf32>
    %116 = arith.addf %110, %115 : vector<16x128xf32>
    %117 = vector.extract_strided_slice %2 {offsets = [0, 9], sizes = [16, 1], strides = [1, 1]} : vector<16x12xf32> to vector<16x1xf32>
    %118 = vector.extract_strided_slice %60 {offsets = [9, 0], sizes = [1, 128], strides = [1, 1]} : vector<12x128xf32> to vector<1x128xf32>
    %119 = vector.broadcast %117 : vector<16x1xf32> to vector<16x128xf32>
    %120 = vector.broadcast %118 : vector<1x128xf32> to vector<16x128xf32>
    %121 = arith.mulf %119, %120 : vector<16x128xf32>
    %122 = arith.addf %116, %121 : vector<16x128xf32>
    %123 = vector.extract_strided_slice %2 {offsets = [0, 10], sizes = [16, 1], strides = [1, 1]} : vector<16x12xf32> to vector<16x1xf32>
    %124 = vector.extract_strided_slice %60 {offsets = [10, 0], sizes = [1, 128], strides = [1, 1]} : vector<12x128xf32> to vector<1x128xf32>
    %125 = vector.broadcast %123 : vector<16x1xf32> to vector<16x128xf32>
    %126 = vector.broadcast %124 : vector<1x128xf32> to vector<16x128xf32>
    %127 = arith.mulf %125, %126 : vector<16x128xf32>
    %128 = arith.addf %122, %127 : vector<16x128xf32>
    %129 = vector.extract_strided_slice %2 {offsets = [0, 11], sizes = [16, 1], strides = [1, 1]} : vector<16x12xf32> to vector<16x1xf32>
    %130 = vector.extract_strided_slice %60 {offsets = [11, 0], sizes = [1, 128], strides = [1, 1]} : vector<12x128xf32> to vector<1x128xf32>
    %131 = vector.broadcast %129 : vector<16x1xf32> to vector<16x128xf32>
    %132 = vector.broadcast %130 : vector<1x128xf32> to vector<16x128xf32>
    %133 = arith.mulf %131, %132 : vector<16x128xf32>
    %134 = arith.addf %128, %133 : vector<16x128xf32>
    %cst_17 = arith.constant 0.000000e+00 : f32
    %135 = vector.broadcast %cst_17 : f32 to vector<16x128xf32>
    %136 = arith.maximumf %134, %135 : vector<16x128xf32>
    %137 = vector.shape_cast %5 : vector<8x1xf32> to vector<8x1xf32>
    %138 = vector.broadcast %137 : vector<8x1xf32> to vector<8x128xf32>
    %139 = vector.extract_strided_slice %4 {offsets = [0, 0], sizes = [8, 1], strides = [1, 1]} : vector<8x16xf32> to vector<8x1xf32>
    %140 = vector.extract_strided_slice %136 {offsets = [0, 0], sizes = [1, 128], strides = [1, 1]} : vector<16x128xf32> to vector<1x128xf32>
    %141 = vector.broadcast %139 : vector<8x1xf32> to vector<8x128xf32>
    %142 = vector.broadcast %140 : vector<1x128xf32> to vector<8x128xf32>
    %143 = arith.mulf %141, %142 : vector<8x128xf32>
    %144 = arith.addf %138, %143 : vector<8x128xf32>
    %145 = vector.extract_strided_slice %4 {offsets = [0, 1], sizes = [8, 1], strides = [1, 1]} : vector<8x16xf32> to vector<8x1xf32>
    %146 = vector.extract_strided_slice %136 {offsets = [1, 0], sizes = [1, 128], strides = [1, 1]} : vector<16x128xf32> to vector<1x128xf32>
    %147 = vector.broadcast %145 : vector<8x1xf32> to vector<8x128xf32>
    %148 = vector.broadcast %146 : vector<1x128xf32> to vector<8x128xf32>
    %149 = arith.mulf %147, %148 : vector<8x128xf32>
    %150 = arith.addf %144, %149 : vector<8x128xf32>
    %151 = vector.extract_strided_slice %4 {offsets = [0, 2], sizes = [8, 1], strides = [1, 1]} : vector<8x16xf32> to vector<8x1xf32>
    %152 = vector.extract_strided_slice %136 {offsets = [2, 0], sizes = [1, 128], strides = [1, 1]} : vector<16x128xf32> to vector<1x128xf32>
    %153 = vector.broadcast %151 : vector<8x1xf32> to vector<8x128xf32>
    %154 = vector.broadcast %152 : vector<1x128xf32> to vector<8x128xf32>
    %155 = arith.mulf %153, %154 : vector<8x128xf32>
    %156 = arith.addf %150, %155 : vector<8x128xf32>
    %157 = vector.extract_strided_slice %4 {offsets = [0, 3], sizes = [8, 1], strides = [1, 1]} : vector<8x16xf32> to vector<8x1xf32>
    %158 = vector.extract_strided_slice %136 {offsets = [3, 0], sizes = [1, 128], strides = [1, 1]} : vector<16x128xf32> to vector<1x128xf32>
    %159 = vector.broadcast %157 : vector<8x1xf32> to vector<8x128xf32>
    %160 = vector.broadcast %158 : vector<1x128xf32> to vector<8x128xf32>
    %161 = arith.mulf %159, %160 : vector<8x128xf32>
    %162 = arith.addf %156, %161 : vector<8x128xf32>
    %163 = vector.extract_strided_slice %4 {offsets = [0, 4], sizes = [8, 1], strides = [1, 1]} : vector<8x16xf32> to vector<8x1xf32>
    %164 = vector.extract_strided_slice %136 {offsets = [4, 0], sizes = [1, 128], strides = [1, 1]} : vector<16x128xf32> to vector<1x128xf32>
    %165 = vector.broadcast %163 : vector<8x1xf32> to vector<8x128xf32>
    %166 = vector.broadcast %164 : vector<1x128xf32> to vector<8x128xf32>
    %167 = arith.mulf %165, %166 : vector<8x128xf32>
    %168 = arith.addf %162, %167 : vector<8x128xf32>
    %169 = vector.extract_strided_slice %4 {offsets = [0, 5], sizes = [8, 1], strides = [1, 1]} : vector<8x16xf32> to vector<8x1xf32>
    %170 = vector.extract_strided_slice %136 {offsets = [5, 0], sizes = [1, 128], strides = [1, 1]} : vector<16x128xf32> to vector<1x128xf32>
    %171 = vector.broadcast %169 : vector<8x1xf32> to vector<8x128xf32>
    %172 = vector.broadcast %170 : vector<1x128xf32> to vector<8x128xf32>
    %173 = arith.mulf %171, %172 : vector<8x128xf32>
    %174 = arith.addf %168, %173 : vector<8x128xf32>
    %175 = vector.extract_strided_slice %4 {offsets = [0, 6], sizes = [8, 1], strides = [1, 1]} : vector<8x16xf32> to vector<8x1xf32>
    %176 = vector.extract_strided_slice %136 {offsets = [6, 0], sizes = [1, 128], strides = [1, 1]} : vector<16x128xf32> to vector<1x128xf32>
    %177 = vector.broadcast %175 : vector<8x1xf32> to vector<8x128xf32>
    %178 = vector.broadcast %176 : vector<1x128xf32> to vector<8x128xf32>
    %179 = arith.mulf %177, %178 : vector<8x128xf32>
    %180 = arith.addf %174, %179 : vector<8x128xf32>
    %181 = vector.extract_strided_slice %4 {offsets = [0, 7], sizes = [8, 1], strides = [1, 1]} : vector<8x16xf32> to vector<8x1xf32>
    %182 = vector.extract_strided_slice %136 {offsets = [7, 0], sizes = [1, 128], strides = [1, 1]} : vector<16x128xf32> to vector<1x128xf32>
    %183 = vector.broadcast %181 : vector<8x1xf32> to vector<8x128xf32>
    %184 = vector.broadcast %182 : vector<1x128xf32> to vector<8x128xf32>
    %185 = arith.mulf %183, %184 : vector<8x128xf32>
    %186 = arith.addf %180, %185 : vector<8x128xf32>
    %187 = vector.extract_strided_slice %4 {offsets = [0, 8], sizes = [8, 1], strides = [1, 1]} : vector<8x16xf32> to vector<8x1xf32>
    %188 = vector.extract_strided_slice %136 {offsets = [8, 0], sizes = [1, 128], strides = [1, 1]} : vector<16x128xf32> to vector<1x128xf32>
    %189 = vector.broadcast %187 : vector<8x1xf32> to vector<8x128xf32>
    %190 = vector.broadcast %188 : vector<1x128xf32> to vector<8x128xf32>
    %191 = arith.mulf %189, %190 : vector<8x128xf32>
    %192 = arith.addf %186, %191 : vector<8x128xf32>
    %193 = vector.extract_strided_slice %4 {offsets = [0, 9], sizes = [8, 1], strides = [1, 1]} : vector<8x16xf32> to vector<8x1xf32>
    %194 = vector.extract_strided_slice %136 {offsets = [9, 0], sizes = [1, 128], strides = [1, 1]} : vector<16x128xf32> to vector<1x128xf32>
    %195 = vector.broadcast %193 : vector<8x1xf32> to vector<8x128xf32>
    %196 = vector.broadcast %194 : vector<1x128xf32> to vector<8x128xf32>
    %197 = arith.mulf %195, %196 : vector<8x128xf32>
    %198 = arith.addf %192, %197 : vector<8x128xf32>
    %199 = vector.extract_strided_slice %4 {offsets = [0, 10], sizes = [8, 1], strides = [1, 1]} : vector<8x16xf32> to vector<8x1xf32>
    %200 = vector.extract_strided_slice %136 {offsets = [10, 0], sizes = [1, 128], strides = [1, 1]} : vector<16x128xf32> to vector<1x128xf32>
    %201 = vector.broadcast %199 : vector<8x1xf32> to vector<8x128xf32>
    %202 = vector.broadcast %200 : vector<1x128xf32> to vector<8x128xf32>
    %203 = arith.mulf %201, %202 : vector<8x128xf32>
    %204 = arith.addf %198, %203 : vector<8x128xf32>
    %205 = vector.extract_strided_slice %4 {offsets = [0, 11], sizes = [8, 1], strides = [1, 1]} : vector<8x16xf32> to vector<8x1xf32>
    %206 = vector.extract_strided_slice %136 {offsets = [11, 0], sizes = [1, 128], strides = [1, 1]} : vector<16x128xf32> to vector<1x128xf32>
    %207 = vector.broadcast %205 : vector<8x1xf32> to vector<8x128xf32>
    %208 = vector.broadcast %206 : vector<1x128xf32> to vector<8x128xf32>
    %209 = arith.mulf %207, %208 : vector<8x128xf32>
    %210 = arith.addf %204, %209 : vector<8x128xf32>
    %211 = vector.extract_strided_slice %4 {offsets = [0, 12], sizes = [8, 1], strides = [1, 1]} : vector<8x16xf32> to vector<8x1xf32>
    %212 = vector.extract_strided_slice %136 {offsets = [12, 0], sizes = [1, 128], strides = [1, 1]} : vector<16x128xf32> to vector<1x128xf32>
    %213 = vector.broadcast %211 : vector<8x1xf32> to vector<8x128xf32>
    %214 = vector.broadcast %212 : vector<1x128xf32> to vector<8x128xf32>
    %215 = arith.mulf %213, %214 : vector<8x128xf32>
    %216 = arith.addf %210, %215 : vector<8x128xf32>
    %217 = vector.extract_strided_slice %4 {offsets = [0, 13], sizes = [8, 1], strides = [1, 1]} : vector<8x16xf32> to vector<8x1xf32>
    %218 = vector.extract_strided_slice %136 {offsets = [13, 0], sizes = [1, 128], strides = [1, 1]} : vector<16x128xf32> to vector<1x128xf32>
    %219 = vector.broadcast %217 : vector<8x1xf32> to vector<8x128xf32>
    %220 = vector.broadcast %218 : vector<1x128xf32> to vector<8x128xf32>
    %221 = arith.mulf %219, %220 : vector<8x128xf32>
    %222 = arith.addf %216, %221 : vector<8x128xf32>
    %223 = vector.extract_strided_slice %4 {offsets = [0, 14], sizes = [8, 1], strides = [1, 1]} : vector<8x16xf32> to vector<8x1xf32>
    %224 = vector.extract_strided_slice %136 {offsets = [14, 0], sizes = [1, 128], strides = [1, 1]} : vector<16x128xf32> to vector<1x128xf32>
    %225 = vector.broadcast %223 : vector<8x1xf32> to vector<8x128xf32>
    %226 = vector.broadcast %224 : vector<1x128xf32> to vector<8x128xf32>
    %227 = arith.mulf %225, %226 : vector<8x128xf32>
    %228 = arith.addf %222, %227 : vector<8x128xf32>
    %229 = vector.extract_strided_slice %4 {offsets = [0, 15], sizes = [8, 1], strides = [1, 1]} : vector<8x16xf32> to vector<8x1xf32>
    %230 = vector.extract_strided_slice %136 {offsets = [15, 0], sizes = [1, 128], strides = [1, 1]} : vector<16x128xf32> to vector<1x128xf32>
    %231 = vector.broadcast %229 : vector<8x1xf32> to vector<8x128xf32>
    %232 = vector.broadcast %230 : vector<1x128xf32> to vector<8x128xf32>
    %233 = arith.mulf %231, %232 : vector<8x128xf32>
    %234 = arith.addf %228, %233 : vector<8x128xf32>
    %cst_18 = arith.constant 0.000000e+00 : f32
    %235 = vector.broadcast %cst_18 : f32 to vector<8x128xf32>
    %236 = arith.maximumf %234, %235 : vector<8x128xf32>
    %237 = vector.broadcast %6 : vector<8x1xf32> to vector<8x128xf32>
    %238 = arith.mulf %236, %237 : vector<8x128xf32>
    %cst_19 = arith.constant dense<0.000000e+00> : vector<128xf32>
    %239 = vector.multi_reduction <add>, %238, %cst_19 [0] : vector<8x128xf32> to vector<128xf32>
    %240 = vector.shape_cast %239 : vector<128xf32> to vector<1x128xf32>
    %241 = vector.broadcast %7 : vector<1x1xf32> to vector<1x128xf32>
    %242 = arith.addf %240, %241 : vector<1x128xf32>
    %243 = arith.negf %242 : vector<1x128xf32>
    %244 = math.exp %243 : vector<1x128xf32>
    %cst_20 = arith.constant 1.000000e+00 : f32
    %245 = vector.broadcast %cst_20 : f32 to vector<1x128xf32>
    %246 = arith.addf %245, %244 : vector<1x128xf32>
    %247 = arith.divf %245, %246 : vector<1x128xf32>
    %c0_21 = arith.constant 0 : index
    %c0_22 = arith.constant 0 : index
    %248 = vector.load %arg10[%c0_21, %c0_22] : memref<1x128xf32, #tpu.memory_space<vmem>>, vector<1x128xf32>
    tpu.vector_store %arg10[%c0_21, %c0_22], %247 {strides = array<i32>} : memref<1x128xf32, #tpu.memory_space<vmem>>, vector<1x128xf32>,
    return
  }
  func.func @transform_0(%arg0: i32) -> (i32, i32) {
    %c0_i32 = arith.constant 0 : i32
    %c0_i32_0 = arith.constant 0 : i32
    return %c0_i32, %arg0 : i32, i32
  }
  func.func @transform_1(%arg0: i32) -> (i32, i32) {
    %c0_i32 = arith.constant 0 : i32
    %c0_i32_0 = arith.constant 0 : i32
    %c0_i32_1 = arith.constant 0 : i32
    return %c0_i32, %c0_i32_0 : i32, i32
  }
  func.func @transform_2(%arg0: i32) -> (i32, i32) {
    %c0_i32 = arith.constant 0 : i32
    %c0_i32_0 = arith.constant 0 : i32
    %c0_i32_1 = arith.constant 0 : i32
    return %c0_i32, %c0_i32_0 : i32, i32
  }
  func.func @transform_3(%arg0: i32) -> (i32, i32) {
    %c0_i32 = arith.constant 0 : i32
    %c0_i32_0 = arith.constant 0 : i32
    %c0_i32_1 = arith.constant 0 : i32
    return %c0_i32, %c0_i32_0 : i32, i32
  }
  func.func @transform_4(%arg0: i32) -> (i32, i32) {
    %c0_i32 = arith.constant 0 : i32
    %c0_i32_0 = arith.constant 0 : i32
    %c0_i32_1 = arith.constant 0 : i32
    return %c0_i32, %c0_i32_0 : i32, i32
  }
  func.func @transform_5(%arg0: i32) -> (i32, i32) {
    %c0_i32 = arith.constant 0 : i32
    %c0_i32_0 = arith.constant 0 : i32
    %c0_i32_1 = arith.constant 0 : i32
    return %c0_i32, %c0_i32_0 : i32, i32
  }
  func.func @transform_6(%arg0: i32) -> (i32, i32) {
    %c0_i32 = arith.constant 0 : i32
    %c0_i32_0 = arith.constant 0 : i32
    %c0_i32_1 = arith.constant 0 : i32
    return %c0_i32, %c0_i32_0 : i32, i32
  }
  func.func @transform_7(%arg0: i32) -> (i32, i32) {
    %c0_i32 = arith.constant 0 : i32
    %c0_i32_0 = arith.constant 0 : i32
    %c0_i32_1 = arith.constant 0 : i32
    return %c0_i32, %c0_i32_0 : i32, i32
  }
  func.func @transform_8(%arg0: i32) -> (i32, i32) {
    %c0_i32 = arith.constant 0 : i32
    %c0_i32_0 = arith.constant 0 : i32
    %c0_i32_1 = arith.constant 0 : i32
    return %c0_i32, %c0_i32_0 : i32, i32
  }
  func.func @transform_9(%arg0: i32) -> (i32, i32) {
    %c0_i32 = arith.constant 0 : i32
    %c0_i32_0 = arith.constant 0 : i32
    return %c0_i32, %arg0 : i32, i32
  }
}

</mosaic_0001>

<llo_original>
// kernel: tpu_custom_call.1
$region0: #{tpu_custom_call.1}
  #allocation0 [shape = 'u32[]', space=smem, size = 0x4, offset = 0x4, fixed_abs, tag = 'smem constant byte address 0x4 - core index']
  #allocation1 [shape = 'u32[144,128]{1,0:T(1,128)}', space=vmem, size = 0x12000, scoped, tag = 'internal scratch']
  #allocation2 [shape = 'f32[1,1]{1,0:T(1,128)S(1)}', space=vmem, size = 0x200, scoped, tag = 'scoped memory for tpu_custom_call.1']
  %s0 = inlined_call_operand.vmem [shape: f32[8,128], index: 0, kind: input, shape index: {}]
  %s1 = inlined_call_operand.vmem [shape: f32[12,8], index: 1, kind: input, shape index: {}]
  %s2 = inlined_call_operand.vmem [shape: f32[12,1], index: 2, kind: input, shape index: {}]
  %s3 = inlined_call_operand.vmem [shape: f32[16,12], index: 3, kind: input, shape index: {}]
  %s4 = inlined_call_operand.vmem [shape: f32[16,1], index: 4, kind: input, shape index: {}]
  %s5 = inlined_call_operand.vmem [shape: f32[8,16], index: 5, kind: input, shape index: {}]
  %s6 = inlined_call_operand.vmem [shape: f32[8,1], index: 6, kind: input, shape index: {}]
  %s7 = inlined_call_operand.vmem [shape: f32[8,1], index: 7, kind: input, shape index: {}]
  %s8 = inlined_call_operand.<no memory space> [shape: f32[1,1], index: 8, kind: input, shape index: {}]
  %s9 = inlined_call_operand.hbm [shape: f32[1,128], index: 9, kind: output, shape index: {}]
  %s10 = sld [smem:[#allocation0]]
  $region46: #{tpu_custom_call.1} parent=0
    _
  %s12 = ssub.s32 1, %s10
  %s13 = scalar_select 0, %s12, %s10
  %v14 = vstv %s8
  %15 = vst [vmem:[#allocation2] sm:$0x1] %v14
  $region1: #{tpu_custom_call.1} parent=0
    #allocation3 [shape = 'u8[512]{0}', space=vmem, size = 0x400, scoped, tag = 'output window, operand 0, single buffered']
    #allocation4 [shape = 's32[1]{0}', space=sflag, size = 0x4, scoped, tag = 'scoped memory for tpu_custom_call.1']
    %16 = vsyncpa [#allocation4], 0
    // Predicated region
    $region2: #{tpu_custom_call.1} parent=1 // pred_check
      _
    $region3: #{tpu_custom_call.1} parent=1 // pred_check_branch
      %18 = sbr.rel (0) target = $region5
    $region4: #{tpu_custom_call.1} parent=1 // pred_region
      _
    $region5: #{tpu_custom_call.1} parent=1 // pred_fallthru
      _
    // Predicated region
    $region6: #{tpu_custom_call.1} parent=1 // pred_check
      _
    $region7: #{tpu_custom_call.1} parent=1 // pred_check_branch
      %20 = sbr.rel (0) target = $region9
    $region8: #{tpu_custom_call.1} parent=1 // pred_region
      _
    $region9: #{tpu_custom_call.1} parent=1 // pred_fallthru
      _
    // Predicated region
    $region10: #{tpu_custom_call.1} parent=1 // pred_check
      _
    $region11: #{tpu_custom_call.1} parent=1 // pred_check_branch
      %22 = sbr.rel (0) target = $region13
    $region12: #{tpu_custom_call.1} parent=1 // pred_region
      _
    $region13: #{tpu_custom_call.1} parent=1 // pred_fallthru
      _
    // Predicated region
    $region14: #{tpu_custom_call.1} parent=1 // pred_check
      _
    $region15: #{tpu_custom_call.1} parent=1 // pred_check_branch
      %24 = sbr.rel (0) target = $region17
    $region16: #{tpu_custom_call.1} parent=1 // pred_region
      _
    $region17: #{tpu_custom_call.1} parent=1 // pred_fallthru
      _
    // Predicated region
    $region18: #{tpu_custom_call.1} parent=1 // pred_check
      _
    $region19: #{tpu_custom_call.1} parent=1 // pred_check_branch
      %26 = sbr.rel (0) target = $region21
    $region20: #{tpu_custom_call.1} parent=1 // pred_region
      _
    $region21: #{tpu_custom_call.1} parent=1 // pred_fallthru
      _
    // Predicated region
    $region22: #{tpu_custom_call.1} parent=1 // pred_check
      _
    $region23: #{tpu_custom_call.1} parent=1 // pred_check_branch
      %28 = sbr.rel (0) target = $region25
    $region24: #{tpu_custom_call.1} parent=1 // pred_region
      _
    $region25: #{tpu_custom_call.1} parent=1 // pred_fallthru
      _
    // Predicated region
    $region26: #{tpu_custom_call.1} parent=1 // pred_check
      _
    $region27: #{tpu_custom_call.1} parent=1 // pred_check_branch
      %30 = sbr.rel (0) target = $region29
    $region28: #{tpu_custom_call.1} parent=1 // pred_region
      _
    $region29: #{tpu_custom_call.1} parent=1 // pred_fallthru
      _
    // Predicated region
    $region30: #{tpu_custom_call.1} parent=1 // pred_check
      _
    $region31: #{tpu_custom_call.1} parent=1 // pred_check_branch
      %32 = sbr.rel (0) target = $region33
    $region32: #{tpu_custom_call.1} parent=1 // pred_region
      _
    $region33: #{tpu_custom_call.1} parent=1 // pred_fallthru
      _
    // Predicated region
    $region34: #{tpu_custom_call.1} parent=1 // pred_check
      _
    $region35: #{tpu_custom_call.1} parent=1 // pred_check_branch
      %34 = sbr.rel (0) target = $region37
    $region36: #{tpu_custom_call.1} parent=1 // pred_region
      _
    $region37: #{tpu_custom_call.1} parent=1 // pred_fallthru
      _
    %v35 = vld [vmem:[%s1] sm:$0xff]
    %v36 = vld [vmem:[%s1 + $0x8] sm:$0xf]
    %v37 = vld [vmem:[%s2] sm:$0xff]
    %v38 = vld [vmem:[%s2 + $0x8] sm:$0xf]
    %v39 = vld [vmem:[%s3] sm:$0xff]
    %v40 = vld [vmem:[%s3 + $0x8] sm:$0xff]
    %v41 = vld [vmem:[%s4] sm:$0xff]
    %v42 = vld [vmem:[%s4 + $0x8] sm:$0xff]
    %v43 = vld [vmem:[%s5] sm:$0xff]
    %v44 = vld [vmem:[%s6] sm:$0xff]
    %v45 = vld [vmem:[%s7] sm:$0xff]
    %v46 = vld [vmem:[#allocation2] sm:$0x1]
    %v47 = vld [vmem:[%s0] sm:$0xff]
    %49 = vset.pattern.permute.xlu0 0
    %50 = vperm.xlu0 %49, %v37
    %v51 = vpop.permute.xlu0 %50
    %54 = vset.pattern.permute.xlu0 0
    %55 = vperm.xlu0 %54, %v38
    %v56 = vpop.permute.xlu0 %55
    %59 = vset.pattern.permute.xlu0 0
    %60 = vperm.xlu0 %59, %v35
    %v61 = vpop.permute.xlu0 %60
    %64 = vset.pattern.permute.xlu0 0
    %65 = vperm.xlu0 %64, %v36
    %v66 = vpop.permute.xlu0 %65
    %v68 = vlaneseq
    %v69 = vshrl.u32 %v68, 7
    %v70 = vsub.s32 0, %v69
    %v71 = vrot.slane %v47, %v70
    %v72 = vmul.f32 %v61, %v71
    %v73 = vmul.f32 %v66, %v71
    %v74 = vadd.f32 %v51, %v72
    %v75 = vadd.f32 %v56, %v73
    %76 = vset.pattern.permute.xlu0 1
    %77 = vperm.xlu0 %76, %v35
    %v78 = vpop.permute.xlu0 %77
    %80 = vset.pattern.permute.xlu0 1
    %81 = vperm.xlu0 %80, %v36
    %v82 = vpop.permute.xlu0 %81
    %v84 = vlaneseq
    %v85 = vshrl.u32 %v84, 7
    %v86 = vsub.s32 1, %v85
    %v87 = vrot.slane %v47, %v86
    %v88 = vmul.f32 %v78, %v87
    %v89 = vmul.f32 %v82, %v87
    %v90 = vadd.f32 %v74, %v88
    %v91 = vadd.f32 %v75, %v89
    %92 = vset.pattern.permute.xlu0 2
    %93 = vperm.xlu0 %92, %v35
    %v94 = vpop.permute.xlu0 %93
    %96 = vset.pattern.permute.xlu0 2
    %97 = vperm.xlu0 %96, %v36
    %v98 = vpop.permute.xlu0 %97
    %v100 = vlaneseq
    %v101 = vshrl.u32 %v100, 7
    %v102 = vsub.s32 2, %v101
    %v103 = vrot.slane %v47, %v102
    %v104 = vmul.f32 %v94, %v103
    %v105 = vmul.f32 %v98, %v103
    %v106 = vadd.f32 %v90, %v104
    %v107 = vadd.f32 %v91, %v105
    %108 = vset.pattern.permute.xlu0 3
    %109 = vperm.xlu0 %108, %v35
    %v110 = vpop.permute.xlu0 %109
    %112 = vset.pattern.permute.xlu0 3
    %113 = vperm.xlu0 %112, %v36
    %v114 = vpop.permute.xlu0 %113
    %v116 = vlaneseq
    %v117 = vshrl.u32 %v116, 7
    %v118 = vsub.s32 3, %v117
    %v119 = vrot.slane %v47, %v118
    %v120 = vmul.f32 %v110, %v119
    %v121 = vmul.f32 %v114, %v119
    %v122 = vadd.f32 %v106, %v120
    %v123 = vadd.f32 %v107, %v121
    %124 = vset.pattern.permute.xlu0 4
    %125 = vperm.xlu0 %124, %v35
    %v126 = vpop.permute.xlu0 %125
    %128 = vset.pattern.permute.xlu0 4
    %129 = vperm.xlu0 %128, %v36
    %v130 = vpop.permute.xlu0 %129
    %v132 = vlaneseq
    %v133 = vshrl.u32 %v132, 7
    %v134 = vsub.s32 4, %v133
    %v135 = vrot.slane %v47, %v134
    %v136 = vmul.f32 %v126, %v135
    %v137 = vmul.f32 %v130, %v135
    %v138 = vadd.f32 %v122, %v136
    %v139 = vadd.f32 %v123, %v137
    %140 = vset.pattern.permute.xlu0 5
    %141 = vperm.xlu0 %140, %v35
    %v142 = vpop.permute.xlu0 %141
    %144 = vset.pattern.permute.xlu0 5
    %145 = vperm.xlu0 %144, %v36
    %v146 = vpop.permute.xlu0 %145
    %v148 = vlaneseq
    %v149 = vshrl.u32 %v148, 7
    %v150 = vsub.s32 5, %v149
    %v151 = vrot.slane %v47, %v150
    %v152 = vmul.f32 %v142, %v151
    %v153 = vmul.f32 %v146, %v151
    %v154 = vadd.f32 %v138, %v152
    %v155 = vadd.f32 %v139, %v153
    %156 = vset.pattern.permute.xlu0 6
    %157 = vperm.xlu0 %156, %v35
    %v158 = vpop.permute.xlu0 %157
    %160 = vset.pattern.permute.xlu0 6
    %161 = vperm.xlu0 %160, %v36
    %v162 = vpop.permute.xlu0 %161
    %v164 = vlaneseq
    %v165 = vshrl.u32 %v164, 7
    %v166 = vsub.s32 6, %v165
    %v167 = vrot.slane %v47, %v166
    %v168 = vmul.f32 %v158, %v167
    %v169 = vmul.f32 %v162, %v167
    %v170 = vadd.f32 %v154, %v168
    %v171 = vadd.f32 %v155, %v169
    %172 = vset.pattern.permute.xlu0 7
    %173 = vperm.xlu0 %172, %v35
    %v174 = vpop.permute.xlu0 %173
    %176 = vset.pattern.permute.xlu0 7
    %177 = vperm.xlu0 %176, %v36
    %v178 = vpop.permute.xlu0 %177
    %v180 = vlaneseq
    %v181 = vshrl.u32 %v180, 7
    %v182 = vsub.s32 7, %v181
    %v183 = vrot.slane %v47, %v182
    %v184 = vmul.f32 %v174, %v183
    %v185 = vmul.f32 %v178, %v183
    %v186 = vadd.f32 %v170, %v184
    %v187 = vadd.f32 %v171, %v185
    %v188 = vmax.f32 %v186, 0.0
    %v189 = vmax.f32 %v187, 0.0
    %191 = vset.pattern.permute.xlu0 0
    %192 = vperm.xlu0 %191, %v41
    %v193 = vpop.permute.xlu0 %192
    %196 = vset.pattern.permute.xlu0 0
    %197 = vperm.xlu0 %196, %v42
    %v198 = vpop.permute.xlu0 %197
    %201 = vset.pattern.permute.xlu0 0
    %202 = vperm.xlu0 %201, %v39
    %v203 = vpop.permute.xlu0 %202
    %206 = vset.pattern.permute.xlu0 0
    %207 = vperm.xlu0 %206, %v40
    %v208 = vpop.permute.xlu0 %207
    %v210 = vlaneseq
    %v211 = vshrl.u32 %v210, 7
    %v212 = vsub.s32 0, %v211
    %v213 = vrot.slane %v188, %v212
    %v214 = vmul.f32 %v203, %v213
    %v215 = vmul.f32 %v208, %v213
    %v216 = vadd.f32 %v193, %v214
    %v217 = vadd.f32 %v198, %v215
    %218 = vset.pattern.permute.xlu0 1
    %219 = vperm.xlu0 %218, %v39
    %v220 = vpop.permute.xlu0 %219
    %222 = vset.pattern.permute.xlu0 1
    %223 = vperm.xlu0 %222, %v40
    %v224 = vpop.permute.xlu0 %223
    %v226 = vlaneseq
    %v227 = vshrl.u32 %v226, 7
    %v228 = vsub.s32 1, %v227
    %v229 = vrot.slane %v188, %v228
    %v230 = vmul.f32 %v220, %v229
    %v231 = vmul.f32 %v224, %v229
    %v232 = vadd.f32 %v216, %v230
    %v233 = vadd.f32 %v217, %v231
    %234 = vset.pattern.permute.xlu0 2
    %235 = vperm.xlu0 %234, %v39
    %v236 = vpop.permute.xlu0 %235
    %238 = vset.pattern.permute.xlu0 2
    %239 = vperm.xlu0 %238, %v40
    %v240 = vpop.permute.xlu0 %239
    %v242 = vlaneseq
    %v243 = vshrl.u32 %v242, 7
    %v244 = vsub.s32 2, %v243
    %v245 = vrot.slane %v188, %v244
    %v246 = vmul.f32 %v236, %v245
    %v247 = vmul.f32 %v240, %v245
    %v248 = vadd.f32 %v232, %v246
    %v249 = vadd.f32 %v233, %v247
    %250 = vset.pattern.permute.xlu0 3
    %251 = vperm.xlu0 %250, %v39
    %v252 = vpop.permute.xlu0 %251
    %254 = vset.pattern.permute.xlu0 3
    %255 = vperm.xlu0 %254, %v40
    %v256 = vpop.permute.xlu0 %255
    %v258 = vlaneseq
    %v259 = vshrl.u32 %v258, 7
    %v260 = vsub.s32 3, %v259
    %v261 = vrot.slane %v188, %v260
    %v262 = vmul.f32 %v252, %v261
    %v263 = vmul.f32 %v256, %v261
    %v264 = vadd.f32 %v248, %v262
    %v265 = vadd.f32 %v249, %v263
    %266 = vset.pattern.permute.xlu0 4
    %267 = vperm.xlu0 %266, %v39
    %v268 = vpop.permute.xlu0 %267
    %270 = vset.pattern.permute.xlu0 4
    %271 = vperm.xlu0 %270, %v40
    %v272 = vpop.permute.xlu0 %271
    %v274 = vlaneseq
    %v275 = vshrl.u32 %v274, 7
    %v276 = vsub.s32 4, %v275
    %v277 = vrot.slane %v188, %v276
    %v278 = vmul.f32 %v268, %v277
    %v279 = vmul.f32 %v272, %v277
    %v280 = vadd.f32 %v264, %v278
    %v281 = vadd.f32 %v265, %v279
    %282 = vset.pattern.permute.xlu0 5
    %283 = vperm.xlu0 %282, %v39
    %v284 = vpop.permute.xlu0 %283
    %286 = vset.pattern.permute.xlu0 5
    %287 = vperm.xlu0 %286, %v40
    %v288 = vpop.permute.xlu0 %287
    %v290 = vlaneseq
    %v291 = vshrl.u32 %v290, 7
    %v292 = vsub.s32 5, %v291
    %v293 = vrot.slane %v188, %v292
    %v294 = vmul.f32 %v284, %v293
    %v295 = vmul.f32 %v288, %v293
    %v296 = vadd.f32 %v280, %v294
    %v297 = vadd.f32 %v281, %v295
    %298 = vset.pattern.permute.xlu0 6
    %299 = vperm.xlu0 %298, %v39
    %v300 = vpop.permute.xlu0 %299
    %302 = vset.pattern.permute.xlu0 6
    %303 = vperm.xlu0 %302, %v40
    %v304 = vpop.permute.xlu0 %303
    %v306 = vlaneseq
    %v307 = vshrl.u32 %v306, 7
    %v308 = vsub.s32 6, %v307
    %v309 = vrot.slane %v188, %v308
    %v310 = vmul.f32 %v300, %v309
    %v311 = vmul.f32 %v304, %v309
    %v312 = vadd.f32 %v296, %v310
    %v313 = vadd.f32 %v297, %v311
    %314 = vset.pattern.permute.xlu0 7
    %315 = vperm.xlu0 %314, %v39
    %v316 = vpop.permute.xlu0 %315
    %318 = vset.pattern.permute.xlu0 7
    %319 = vperm.xlu0 %318, %v40
    %v320 = vpop.permute.xlu0 %319
    %v322 = vlaneseq
    %v323 = vshrl.u32 %v322, 7
    %v324 = vsub.s32 7, %v323
    %v325 = vrot.slane %v188, %v324
    %v326 = vmul.f32 %v316, %v325
    %v327 = vmul.f32 %v320, %v325
    %v328 = vadd.f32 %v312, %v326
    %v329 = vadd.f32 %v313, %v327
    %330 = vset.pattern.permute.xlu0 8
    %331 = vperm.xlu0 %330, %v39
    %v332 = vpop.permute.xlu0 %331
    %334 = vset.pattern.permute.xlu0 8
    %335 = vperm.xlu0 %334, %v40
    %v336 = vpop.permute.xlu0 %335
    %v338 = vlaneseq
    %v339 = vshrl.u32 %v338, 7
    %v340 = vsub.s32 0, %v339
    %v341 = vrot.slane %v189, %v340
    %v342 = vmul.f32 %v332, %v341
    %v343 = vmul.f32 %v336, %v341
    %v344 = vadd.f32 %v328, %v342
    %v345 = vadd.f32 %v329, %v343
    %346 = vset.pattern.permute.xlu0 9
    %347 = vperm.xlu0 %346, %v39
    %v348 = vpop.permute.xlu0 %347
    %350 = vset.pattern.permute.xlu0 9
    %351 = vperm.xlu0 %350, %v40
    %v352 = vpop.permute.xlu0 %351
    %v354 = vlaneseq
    %v355 = vshrl.u32 %v354, 7
    %v356 = vsub.s32 1, %v355
    %v357 = vrot.slane %v189, %v356
    %v358 = vmul.f32 %v348, %v357
    %v359 = vmul.f32 %v352, %v357
    %v360 = vadd.f32 %v344, %v358
    %v361 = vadd.f32 %v345, %v359
    %362 = vset.pattern.permute.xlu0 10
    %363 = vperm.xlu0 %362, %v39
    %v364 = vpop.permute.xlu0 %363
    %366 = vset.pattern.permute.xlu0 10
    %367 = vperm.xlu0 %366, %v40
    %v368 = vpop.permute.xlu0 %367
    %v370 = vlaneseq
    %v371 = vshrl.u32 %v370, 7
    %v372 = vsub.s32 2, %v371
    %v373 = vrot.slane %v189, %v372
    %v374 = vmul.f32 %v364, %v373
    %v375 = vmul.f32 %v368, %v373
    %v376 = vadd.f32 %v360, %v374
    %v377 = vadd.f32 %v361, %v375
    %378 = vset.pattern.permute.xlu0 11
    %379 = vperm.xlu0 %378, %v39
    %v380 = vpop.permute.xlu0 %379
    %382 = vset.pattern.permute.xlu0 11
    %383 = vperm.xlu0 %382, %v40
    %v384 = vpop.permute.xlu0 %383
    %v386 = vlaneseq
    %v387 = vshrl.u32 %v386, 7
    %v388 = vsub.s32 3, %v387
    %v389 = vrot.slane %v189, %v388
    %v390 = vmul.f32 %v380, %v389
    %v391 = vmul.f32 %v384, %v389
    %v392 = vadd.f32 %v376, %v390
    %v393 = vadd.f32 %v377, %v391
    %v394 = vmax.f32 %v392, 0.0
    %v395 = vmax.f32 %v393, 0.0
    %397 = vset.pattern.permute.xlu0 0
    %398 = vperm.xlu0 %397, %v44
    %v399 = vpop.permute.xlu0 %398
    %402 = vset.pattern.permute.xlu0 0
    %403 = vperm.xlu0 %402, %v43
    %v404 = vpop.permute.xlu0 %403
    %v406 = vlaneseq
    %v407 = vshrl.u32 %v406, 7
    %v408 = vsub.s32 0, %v407
    %v409 = vrot.slane %v394, %v408
    %v410 = vmul.f32 %v404, %v409
    %v411 = vadd.f32 %v399, %v410
    %412 = vset.pattern.permute.xlu0 1
    %413 = vperm.xlu0 %412, %v43
    %v414 = vpop.permute.xlu0 %413
    %v416 = vlaneseq
    %v417 = vshrl.u32 %v416, 7
    %v418 = vsub.s32 1, %v417
    %v419 = vrot.slane %v394, %v418
    %v420 = vmul.f32 %v414, %v419
    %v421 = vadd.f32 %v411, %v420
    %422 = vset.pattern.permute.xlu0 2
    %423 = vperm.xlu0 %422, %v43
    %v424 = vpop.permute.xlu0 %423
    %v426 = vlaneseq
    %v427 = vshrl.u32 %v426, 7
    %v428 = vsub.s32 2, %v427
    %v429 = vrot.slane %v394, %v428
    %v430 = vmul.f32 %v424, %v429
    %v431 = vadd.f32 %v421, %v430
    %432 = vset.pattern.permute.xlu0 3
    %433 = vperm.xlu0 %432, %v43
    %v434 = vpop.permute.xlu0 %433
    %v436 = vlaneseq
    %v437 = vshrl.u32 %v436, 7
    %v438 = vsub.s32 3, %v437
    %v439 = vrot.slane %v394, %v438
    %v440 = vmul.f32 %v434, %v439
    %v441 = vadd.f32 %v431, %v440
    %442 = vset.pattern.permute.xlu0 4
    %443 = vperm.xlu0 %442, %v43
    %v444 = vpop.permute.xlu0 %443
    %v446 = vlaneseq
    %v447 = vshrl.u32 %v446, 7
    %v448 = vsub.s32 4, %v447
    %v449 = vrot.slane %v394, %v448
    %v450 = vmul.f32 %v444, %v449
    %v451 = vadd.f32 %v441, %v450
    %452 = vset.pattern.permute.xlu0 5
    %453 = vperm.xlu0 %452, %v43
    %v454 = vpop.permute.xlu0 %453
    %v456 = vlaneseq
    %v457 = vshrl.u32 %v456, 7
    %v458 = vsub.s32 5, %v457
    %v459 = vrot.slane %v394, %v458
    %v460 = vmul.f32 %v454, %v459
    %v461 = vadd.f32 %v451, %v460
    %462 = vset.pattern.permute.xlu0 6
    %463 = vperm.xlu0 %462, %v43
    %v464 = vpop.permute.xlu0 %463
    %v466 = vlaneseq
    %v467 = vshrl.u32 %v466, 7
    %v468 = vsub.s32 6, %v467
    %v469 = vrot.slane %v394, %v468
    %v470 = vmul.f32 %v464, %v469
    %v471 = vadd.f32 %v461, %v470
    %472 = vset.pattern.permute.xlu0 7
    %473 = vperm.xlu0 %472, %v43
    %v474 = vpop.permute.xlu0 %473
    %v476 = vlaneseq
    %v477 = vshrl.u32 %v476, 7
    %v478 = vsub.s32 7, %v477
    %v479 = vrot.slane %v394, %v478
    %v480 = vmul.f32 %v474, %v479
    %v481 = vadd.f32 %v471, %v480
    %482 = vset.pattern.permute.xlu0 8
    %483 = vperm.xlu0 %482, %v43
    %v484 = vpop.permute.xlu0 %483
    %v486 = vlaneseq
    %v487 = vshrl.u32 %v486, 7
    %v488 = vsub.s32 0, %v487
    %v489 = vrot.slane %v395, %v488
    %v490 = vmul.f32 %v484, %v489
    %v491 = vadd.f32 %v481, %v490
    %492 = vset.pattern.permute.xlu0 9
    %493 = vperm.xlu0 %492, %v43
    %v494 = vpop.permute.xlu0 %493
    %v496 = vlaneseq
    %v497 = vshrl.u32 %v496, 7
    %v498 = vsub.s32 1, %v497
    %v499 = vrot.slane %v395, %v498
    %v500 = vmul.f32 %v494, %v499
    %v501 = vadd.f32 %v491, %v500
    %502 = vset.pattern.permute.xlu0 10
    %503 = vperm.xlu0 %502, %v43
    %v504 = vpop.permute.xlu0 %503
    %v506 = vlaneseq
    %v507 = vshrl.u32 %v506, 7
    %v508 = vsub.s32 2, %v507
    %v509 = vrot.slane %v395, %v508
    %v510 = vmul.f32 %v504, %v509
    %v511 = vadd.f32 %v501, %v510
    %512 = vset.pattern.permute.xlu0 11
    %513 = vperm.xlu0 %512, %v43
    %v514 = vpop.permute.xlu0 %513
    %v516 = vlaneseq
    %v517 = vshrl.u32 %v516, 7
    %v518 = vsub.s32 3, %v517
    %v519 = vrot.slane %v395, %v518
    %v520 = vmul.f32 %v514, %v519
    %v521 = vadd.f32 %v511, %v520
    %522 = vset.pattern.permute.xlu0 12
    %523 = vperm.xlu0 %522, %v43
    %v524 = vpop.permute.xlu0 %523
    %v526 = vlaneseq
    %v527 = vshrl.u32 %v526, 7
    %v528 = vsub.s32 4, %v527
    %v529 = vrot.slane %v395, %v528
    %v530 = vmul.f32 %v524, %v529
    %v531 = vadd.f32 %v521, %v530
    %532 = vset.pattern.permute.xlu0 13
    %533 = vperm.xlu0 %532, %v43
    %v534 = vpop.permute.xlu0 %533
    %v536 = vlaneseq
    %v537 = vshrl.u32 %v536, 7
    %v538 = vsub.s32 5, %v537
    %v539 = vrot.slane %v395, %v538
    %v540 = vmul.f32 %v534, %v539
    %v541 = vadd.f32 %v531, %v540
    %542 = vset.pattern.permute.xlu0 14
    %543 = vperm.xlu0 %542, %v43
    %v544 = vpop.permute.xlu0 %543
    %v546 = vlaneseq
    %v547 = vshrl.u32 %v546, 7
    %v548 = vsub.s32 6, %v547
    %v549 = vrot.slane %v395, %v548
    %v550 = vmul.f32 %v544, %v549
    %v551 = vadd.f32 %v541, %v550
    %552 = vset.pattern.permute.xlu0 15
    %553 = vperm.xlu0 %552, %v43
    %v554 = vpop.permute.xlu0 %553
    %v556 = vlaneseq
    %v557 = vshrl.u32 %v556, 7
    %v558 = vsub.s32 7, %v557
    %v559 = vrot.slane %v395, %v558
    %v560 = vmul.f32 %v554, %v559
    %v561 = vadd.f32 %v551, %v560
    %v562 = vmax.f32 %v561, 0.0
    %564 = vset.pattern.permute.xlu0 0
    %565 = vperm.xlu0 %564, %v45
    %v566 = vpop.permute.xlu0 %565
    %v568 = vmul.f32 %v562, %v566
    %v569 = vrot.slane %v568, 4
    %v570 = vadd.f32 %v568, %v569
    %v571 = vrot.slane %v570, 2
    %v572 = vadd.f32 %v570, %v571
    %v573 = vrot.slane %v572, 1
    %v574 = vadd.f32 %v572, %v573
    %576 = vset.pattern.permute.xlu0 0
    %577 = vperm.xlu0 %576, %v46
    %v578 = vpop.permute.xlu0 %577
    %v580 = vlaneseq
    %v581 = vshrl.u32 %v580, 7
    %v582 = vsub.s32 0, %v581
    %v583 = vrot.slane %v578, %v582
    %v584 = vadd.f32 %v574, %v583
    %v585 = vxor.u32 %v584, 2147483648
    %v586 = vmul.f32 %v585, 1.442695
    %v587 = vpow.pop %v586
    %v588 = vadd.f32 %v587, 1.0
    %v589 = vrcp.pop %v588
    %v590 = vmul.f32 1.0, %v589
    %591 = vst [vmem:[#allocation3] sm:$0x1] %v590
    // Predicated region
    $region38: #{tpu_custom_call.1} parent=1 // pred_check
      _
    $region39: #{tpu_custom_call.1} parent=1 // pred_check_branch
      %593 = sbr.rel (0) target = $region41
    $region40: #{tpu_custom_call.1} parent=1 // pred_region
      %s595 = ssub.s32 16, 16
      %596 = vsyncadd [#allocation4], %s595
      %s598 = sshll.u32 [#allocation3], 4
      %s599 = int_to_ptr.vmem [resolvable:$true] %s598
      %601 = dma.vmem_to_hbm [thread:$0]  %s599, 16, %s9, [#allocation4]
    $region41: #{tpu_custom_call.1} parent=1 // pred_fallthru
      _
    // Predicated region
    $region42: #{tpu_custom_call.1} parent=1 // pred_check
      _
    $region43: #{tpu_custom_call.1} parent=1 // pred_check_branch
      %603 = sbr.rel (0) target = $region45
    $region44: #{tpu_custom_call.1} parent=1 // pred_region
      %604 = dma.done [#allocation4], 16
    $region45: #{tpu_custom_call.1} parent=1 // pred_fallthru
      _
    %605 = vsyncpa [#allocation4], 1

</llo_original>
